<compile_context>
chip_gen: v5e
topology: v5e:2x2
jax: 0.10.0
libtpu: 0.0.40
codegen_flags: <defaults>
</compile_context>

<pallas_src>
import math

import jax
import jax.numpy as jnp
from jax import lax
from jax.experimental import pallas as pl
from jax.experimental.pallas import tpu as pltpu

LANE = 128
SUBLANE = 8


def _round_up(a, b):
    return ((a + b - 1) // b) * b


# --------------------------------------------------------------------------
# GELU variants (computed in f32 inside the kernel)
# --------------------------------------------------------------------------
def _gelu_erf(h):
    # exact erf-based GELU: matches torch.nn.GELU() default
    return 0.5 * h * (1.0 + lax.erf(h * jnp.float32(0.7071067811865476)))


def _gelu_tanh(h):
    # tanh approximation (torch GELU(approximate='tanh')); tanh runs on the EUP
    c = jnp.float32(0.7978845608028654)  # sqrt(2/pi)
    return 0.5 * h * (1.0 + jnp.tanh(c * (h + jnp.float32(0.044715) * h * h * h)))


# --------------------------------------------------------------------------
# Kernel
# --------------------------------------------------------------------------
def _make_kernel(n_chunks, hc, gelu):
    """Build the MLP kernel. Returns (kernel_fn, needs_acc_scratch)."""
    act = _gelu_erf if gelu == "erf" else _gelu_tanh

    if n_chunks == 1:
        def kernel(x_ref, w1_ref, b1_ref, w2_ref, b2_ref, o_ref):
            # x_ref:(TM,IN) bf16 | w1_ref:(IN,HID) bf16 | b1_ref:(1,HID) f32
            # w2_ref:(HID,OUT) bf16 | b2_ref:(1,OUT) f32 | o_ref:(TM,OUT)
            x = x_ref[...]
            h = jnp.dot(x, w1_ref[...],
                        preferred_element_type=jnp.float32) + b1_ref[...]
            h = act(h)
            # dropout(p=0.0) -> identity
            y = jnp.dot(h.astype(jnp.bfloat16), w2_ref[...],
                        preferred_element_type=jnp.float32) + b2_ref[...]
            # dropout(p=0.0) -> identity
            o_ref[...] = y.astype(o_ref.dtype)

        return kernel, False

    def kernel(x_ref, w1_ref, b1_ref, w2_ref, b2_ref, o_ref, acc_ref):
        # HID-chunked path: fc1 chunk -> GELU -> accumulate fc2 partial into an
        # f32 VMEM accumulator.  GELU overlaps with MXU work and the full
        # (TM, HID) f32 intermediate never materializes.
        x = x_ref[...]
        for c in range(n_chunks):        # static unroll (n_chunks is a Python int)
            lo = c * hc
            h = jnp.dot(x, w1_ref[:, lo:lo + hc],
                        preferred_element_type=jnp.float32) + b1_ref[:, lo:lo + hc]
            h = act(h)
            part = jnp.dot(h.astype(jnp.bfloat16), w2_ref[lo:lo + hc, :],
                           preferred_element_type=jnp.float32)
            if c == 0:
                acc_ref[...] = part
            else:
                acc_ref[...] += part
        o_ref[...] = (acc_ref[...] + b2_ref[...]).astype(o_ref.dtype)

    return kernel, True


# --------------------------------------------------------------------------
# One-time parameter preparation (out of the per-call hot path)
# --------------------------------------------------------------------------
def prepare_params(w1, b1, w2, b2):
    """Pad to lane multiples, transpose weights to (in, out) layout so the
    matmul RHS has K on the sublane axis (no in-kernel relayout), and cast the
    matmul operands to bf16.  Do this ONCE at parameter-setup time."""
    HID, IN = w1.shape
    OUT, HID2 = w2.shape
    assert HID2 == HID and b1.shape == (HID,) and b2.shape == (OUT,)

    IN_p = _round_up(IN, LANE)
    HID_p = _round_up(HID, LANE)
    OUT_p = _round_up(OUT, LANE)

    w1t = jnp.pad(w1, ((0, HID_p - HID), (0, IN_p - IN))).T    # (IN_p, HID_p)
    w2t = jnp.pad(w2, ((0, OUT_p - OUT), (0, HID_p - HID))).T  # (HID_p, OUT_p)

    return {
        "w1": w1t.astype(jnp.bfloat16),
        "b1": jnp.pad(b1, (0, HID_p - HID)).reshape(1, HID_p).astype(jnp.float32),
        "w2": w2t.astype(jnp.bfloat16),
        "b2": jnp.pad(b2, (0, OUT_p - OUT)).reshape(1, OUT_p).astype(jnp.float32),
        "dims": (IN, HID, OUT),
    }


# --------------------------------------------------------------------------
# Forward pass
# --------------------------------------------------------------------------
def mlp_forward_prepared(x, params, *, tm=512, hid_chunk=512, gelu="tanh",
                         out_dtype=jnp.float32, single_buffer_weights=True):
    """Forward pass using pre-prepared (padded/transposed/bf16) parameters.

    x: (..., IN) activations (f32 or bf16).
    gelu: "tanh" (EUP-native, ~1e-3 from exact) or "erf" (torch parity).
    """
    IN, HID, OUT = params["dims"]
    w1, b1, w2, b2 = params["w1"], params["b1"], params["w2"], params["b2"]
    IN_p, HID_p = w1.shape
    _, OUT_p = w2.shape

    orig_shape = x.shape
    assert orig_shape[-1] == IN
    M = int(math.prod(orig_shape[:-1])) if len(orig_shape) > 1 else 1

    xf = x.reshape(M, IN)
    if xf.dtype != jnp.bfloat16:
        # TODO(synk): accept bf16 activations end-to-end to drop this per-call cast.
        xf = xf.astype(jnp.bfloat16)

    # ----- row tiling (parallel axis) -----
    tm_eff = min(tm, _round_up(M, SUBLANE))
    M_p = _round_up(M, tm_eff)
    # v7x has 2 TensorCores: make sure the "parallel" axis has >= 2 steps when
    # there is enough work, so a small batch does not idle a core.
    if M > SUBLANE and M_p // tm_eff < 2:
        tm_eff = _round_up((M + 1) // 2, SUBLANE)
        M_p = _round_up(M, tm_eff)

    if (M_p, IN_p) != (M, IN):
        xf = jnp.pad(xf, ((0, M_p - M), (0, IN_p - IN)))

    # ----- hidden-dim chunking -----
    hc = min(_round_up(max(hid_chunk, LANE), LANE), HID_p)
    while HID_p % hc:
        hc -= LANE                      # always terminates: LANE divides HID_p
    n_chunks = HID_p // hc
    kernel, has_acc = _make_kernel(n_chunks, hc, gelu)

    # ----- VMEM budget derived from the actual buffers -----
    out_bytes = jnp.dtype(out_dtype).itemsize
    w_copies = 1 if single_buffer_weights else 2
    vmem_need = (
        2 * tm_eff * IN_p * 2                              # x tile (double-buffered, bf16)
        + 2 * tm_eff * OUT_p * out_bytes                   # out tile (double-buffered)
        + w_copies * (IN_p * HID_p + HID_p * OUT_p) * 2    # resident bf16 weights
        + w_copies * (HID_p + OUT_p) * 4                   # biases
        + (tm_eff * OUT_p * 4 if has_acc else 0)           # f32 accumulator scratch
        + 2 * tm_eff * hc * (4 + 2)                        # fc1/GELU chunk temporaries (margin)
    )
    try:
        phys_vmem = int(pltpu.get_tpu_info().vmem_capacity_bytes)
    except Exception:
        phys_vmem = 64 * 1024 * 1024   # conservative: v7x per-TensorCore VMEM
    vmem_limit = int(min(phys_vmem - (4 << 20), max(2 * vmem_need, 32 << 20)))
    # TODO(synk): add a streamed-weight path (emit_pipeline over HID/OUT tiles)
    # for MLPs whose resident weights do not fit VMEM.
    assert vmem_need <= vmem_limit, (
        f"MLP tiles need ~{vmem_need >> 20} MiB VMEM, limit {vmem_limit >> 20} MiB")

    grid = (M_p // tm_eff,)
    cost = pl.CostEstimate(
        flops=2 * M_p * (IN_p * HID_p + HID_p * OUT_p),
        transcendentals=M_p * HID_p,
        bytes_accessed=(xf.size * 2 + w1.size * 2 + w2.size * 2
                        + b1.size * 4 + b2.size * 4 + M_p * OUT_p * out_bytes),
    )
    scratch = [pltpu.VMEM((tm_eff, OUT_p), jnp.float32)] if has_acc else []

    def build(single_buf):
        # Grid-invariant operands: constant index_map; optionally single-buffered.
        wmode = dict(pipeline_mode=pl.Buffered(1)) if single_buf else {}
        return pl.pallas_call(
            kernel,
            out_shape=jax.ShapeDtypeStruct((M_p, OUT_p), out_dtype),
            grid_spec=pltpu.PrefetchScalarGridSpec(
                num_scalar_prefetch=0,
                grid=grid,
                in_specs=[
                    pl.BlockSpec((tm_eff, IN_p), lambda i: (i, 0)),        # activations
                    pl.BlockSpec((IN_p, HID_p), lambda i: (0, 0), **wmode),  # fc1 weight
                    pl.BlockSpec((1, HID_p), lambda i: (0, 0), **wmode),     # fc1 bias
                    pl.BlockSpec((HID_p, OUT_p), lambda i: (0, 0), **wmode),  # fc2 weight
                    pl.BlockSpec((1, OUT_p), lambda i: (0, 0), **wmode),      # fc2 bias
                ],
                out_specs=pl.BlockSpec((tm_eff, OUT_p), lambda i: (i, 0)),
                scratch_shapes=scratch,
            ),
            compiler_params=pltpu.CompilerParams(
                dimension_semantics=("parallel",),
                vmem_limit_bytes=vmem_limit,
            ),
            cost_estimate=cost,
        )

    try:
        out = build(single_buffer_weights)(xf, w1, b1, w2, b2)
    except Exception:
        if not single_buffer_weights:
            raise
        # Fallback for jax versions that reject pipeline_mode on pallas_call specs.
        out = build(False)(xf, w1, b1, w2, b2)

    out = out[:M, :OUT]
    return out.reshape(*orig_shape[:-1], OUT) if len(orig_shape) > 1 else out.reshape(OUT)


def mlp_forward(x, w1, b1, w2, b2, **kwargs):
    """Convenience wrapper matching the nn.Module API (PyTorch (out,in) weights).
    For repeated calls, use prepare_params() once + mlp_forward_prepared()."""
    return mlp_forward_prepared(x, prepare_params(w1, b1, w2, b2), **kwargs)


# --------------------------------------------------------------------------
# Reference + test
# --------------------------------------------------------------------------
def _ref_mlp(x, w1, b1, w2, b2, approximate=False):
    h = jnp.einsum("...i,hi->...h", x, w1) + b1
    h = jax.nn.gelu(h, approximate=approximate)
    return jnp.einsum("...h,oh->...o", h, w2) + b2


def _make_params(key, in_f, hid_f, out_f):
    k1, k2, k3, k4 = jax.random.split(key, 4)
    bnd1 = 1.0 / jnp.sqrt(in_f)
    bnd2 = 1.0 / jnp.sqrt(hid_f)
    w1 = jax.random.uniform(k1, (hid_f, in_f), jnp.float32, -bnd1, bnd1)
    b1 = jax.random.uniform(k2, (hid_f,), jnp.float32, -bnd1, bnd1)
    w2 = jax.random.uniform(k3, (out_f, hid_f), jnp.float32, -bnd2, bnd2)
    b2 = jax.random.uniform(k4, (out_f,), jnp.float32, -bnd2, bnd2)
    return w1, b1, w2, b2


if __name__ == "__main__":
    key = jax.random.PRNGKey(0)
    kx1, kp1, kx2, kp2 = jax.random.split(key, 4)

    # --- small, module-consistent shapes (non-lane-aligned -> exercises padding,
    # --- the >=2-parallel-step split, and the single-chunk kernel) ---
    B, S, IN, HID, OUT = 2, 8, 32, 64, 32
    x = jax.random.normal(kx1, (B, S, IN), dtype=jnp.float32)
    w1, b1, w2, b2 = _make_params(kp1, IN, HID, OUT)
    params = prepare_params(w1, b1, w2, b2)

    # default tanh-GELU path (compare against tanh reference)
    y = jax.block_until_ready(mlp_forward_prepared(x, params))
    y_ref_tanh = _ref_mlp(x, w1, b1, w2, b2, approximate=True)
    assert y.shape == (B, S, OUT)
    assert jnp.allclose(y, y_ref_tanh, atol=2e-2, rtol=2e-2), "mismatch (tanh GELU)"

    # exact erf-GELU path (torch.nn.GELU() parity)
    y_erf = jax.block_until_ready(mlp_forward_prepared(x, params, gelu="erf"))
    y_ref_erf = _ref_mlp(x, w1, b1, w2, b2, approximate=False)
    assert jnp.allclose(y_erf, y_ref_erf, atol=2e-2, rtol=2e-2), "mismatch (erf GELU)"

    # --- lane-aligned shapes exercising the multi-step parallel grid and the
    # --- HID-chunked (accumulator-scratch) path ---
    B2, S2, IN2, HID2, OUT2 = 8, 64, 128, 256, 128   # M = 512
    x2 = jax.random.normal(kx2, (B2, S2, IN2), dtype=jnp.float32)
    w1b, b1b, w2b, b2b = _make_params(kp2, IN2, HID2, OUT2)
    params2 = prepare_params(w1b, b1b, w2b, b2b)

    y2 = jax.block_until_ready(
        mlp_forward_prepared(x2, params2, tm=256, hid_chunk=128, gelu="erf"))
    y2_ref = _ref_mlp(x2, w1b, b1b, w2b, b2b, approximate=False)
    assert y2.shape == (B2, S2, OUT2)
    assert jnp.allclose(y2, y2_ref, atol=2e-2, rtol=2e-2), "mismatch (chunked)"

    # convenience wrapper (prep + forward in one call, like the nn.Module API)
    y3 = jax.block_until_ready(mlp_forward(x, w1, b1, w2, b2))
    assert jnp.allclose(y3, y_ref_tanh, atol=2e-2, rtol=2e-2), "mismatch (wrapper)"

    print("KERNEL_OK")
</pallas_src>

<mosaic_0001>
module attributes {stable_mosaic.version = 11 : i64} {
  func.func @kernel(%arg0: i32, %arg1: memref<8x128xbf16, #tpu.memory_space<vmem>>, %arg2: memref<128x128xbf16, #tpu.memory_space<vmem>>, %arg3: memref<1x128xf32, #tpu.memory_space<vmem>>, %arg4: memref<128x128xbf16, #tpu.memory_space<vmem>>, %arg5: memref<1x128xf32, #tpu.memory_space<vmem>>, %arg6: memref<8x128xf32, #tpu.memory_space<vmem>>) attributes {dimension_semantics = [#tpu.dimension_semantics<parallel>], iteration_bounds = array<i64: 2>, scalar_prefetch = 0 : i64, scratch_operands = 0 : i64, tpu.core_type = #tpu.core_type<tc>, window_params = [{transform_indices = @transform_0, window_bounds = array<i64: 8, 128>}, {pipeline_mode = #tpu.pipeline_mode<synchronous>, transform_indices = @transform_1, window_bounds = array<i64: 128, 128>}, {pipeline_mode = #tpu.pipeline_mode<synchronous>, transform_indices = @transform_2, window_bounds = array<i64: 1, 128>}, {pipeline_mode = #tpu.pipeline_mode<synchronous>, transform_indices = @transform_3, window_bounds = array<i64: 128, 128>}, {pipeline_mode = #tpu.pipeline_mode<synchronous>, transform_indices = @transform_4, window_bounds = array<i64: 1, 128>}, {transform_indices = @transform_5, window_bounds = array<i64: 8, 128>}]} {
    %c0 = arith.constant 0 : index
    %c0_0 = arith.constant 0 : index
    %0 = vector.load %arg1[%c0, %c0_0] : memref<8x128xbf16, #tpu.memory_space<vmem>>, vector<8x128xbf16>
    %c0_1 = arith.constant 0 : index
    %c0_2 = arith.constant 0 : index
    %1 = vector.load %arg2[%c0_1, %c0_2] : memref<128x128xbf16, #tpu.memory_space<vmem>>, vector<128x128xbf16>
    %cst = arith.constant dense<0.000000e+00> : vector<8x128xf32>
    %2 = tpu.matmul %0, %1, %cst {dimension_numbers = #tpu.dot_dimension_numbers<[1], [0], [0], [1], [0, 0, 1, 1], [], []>} : vector<8x128xbf16>, vector<128x128xbf16>, vector<8x128xf32> -> vector<8x128xf32>
    %c0_3 = arith.constant 0 : index
    %c0_4 = arith.constant 0 : index
    %3 = vector.load %arg3[%c0_3, %c0_4] : memref<1x128xf32, #tpu.memory_space<vmem>>, vector<1x128xf32>
    %4 = vector.broadcast %3 : vector<1x128xf32> to vector<8x128xf32>
    %5 = arith.addf %2, %4 : vector<8x128xf32>
    %cst_5 = arith.constant 5.000000e-01 : f32
    %6 = vector.broadcast %cst_5 : f32 to vector<8x128xf32>
    %7 = arith.mulf %6, %5 : vector<8x128xf32>
    %cst_6 = arith.constant 4.471500e-02 : f32
    %8 = vector.broadcast %cst_6 : f32 to vector<8x128xf32>
    %9 = arith.mulf %8, %5 : vector<8x128xf32>
    %10 = arith.mulf %9, %5 : vector<8x128xf32>
    %11 = arith.mulf %10, %5 : vector<8x128xf32>
    %12 = arith.addf %5, %11 : vector<8x128xf32>
    %cst_7 = arith.constant 0.797884583 : f32
    %13 = vector.broadcast %cst_7 : f32 to vector<8x128xf32>
    %14 = arith.mulf %13, %12 : vector<8x128xf32>
    %15 = math.tanh %14 : vector<8x128xf32>
    %cst_8 = arith.constant 1.000000e+00 : f32
    %16 = vector.broadcast %cst_8 : f32 to vector<8x128xf32>
    %17 = arith.addf %16, %15 : vector<8x128xf32>
    %18 = arith.mulf %7, %17 : vector<8x128xf32>
    %19 = arith.truncf %18 : vector<8x128xf32> to vector<8x128xbf16>
    %c0_9 = arith.constant 0 : index
    %c0_10 = arith.constant 0 : index
    %20 = vector.load %arg4[%c0_9, %c0_10] : memref<128x128xbf16, #tpu.memory_space<vmem>>, vector<128x128xbf16>
    %cst_11 = arith.constant dense<0.000000e+00> : vector<8x128xf32>
    %21 = tpu.matmul %19, %20, %cst_11 {dimension_numbers = #tpu.dot_dimension_numbers<[1], [0], [0], [1], [0, 0, 1, 1], [], []>} : vector<8x128xbf16>, vector<128x128xbf16>, vector<8x128xf32> -> vector<8x128xf32>
    %c0_12 = arith.constant 0 : index
    %c0_13 = arith.constant 0 : index
    %22 = vector.load %arg5[%c0_12, %c0_13] : memref<1x128xf32, #tpu.memory_space<vmem>>, vector<1x128xf32>
    %23 = vector.broadcast %22 : vector<1x128xf32> to vector<8x128xf32>
    %24 = arith.addf %21, %23 : vector<8x128xf32>
    %c0_14 = arith.constant 0 : index
    %c0_15 = arith.constant 0 : index
    %25 = vector.load %arg6[%c0_14, %c0_15] : memref<8x128xf32, #tpu.memory_space<vmem>>, vector<8x128xf32>
    tpu.vector_store %arg6[%c0_14, %c0_15], %24 {strides = array<i32>} : memref<8x128xf32, #tpu.memory_space<vmem>>, vector<8x128xf32>,
    return
  }
  func.func @transform_0(%arg0: i32) -> (i32, i32) {
    %c0_i32 = arith.constant 0 : i32
    %c0_i32_0 = arith.constant 0 : i32
    return %arg0, %c0_i32 : i32, i32
  }
  func.func @transform_1(%arg0: i32) -> (i32, i32) {
    %c0_i32 = arith.constant 0 : i32
    %c0_i32_0 = arith.constant 0 : i32
    %c0_i32_1 = arith.constant 0 : i32
    return %c0_i32, %c0_i32_0 : i32, i32
  }
  func.func @transform_2(%arg0: i32) -> (i32, i32) {
    %c0_i32 = arith.constant 0 : i32
    %c0_i32_0 = arith.constant 0 : i32
    %c0_i32_1 = arith.constant 0 : i32
    return %c0_i32, %c0_i32_0 : i32, i32
  }
  func.func @transform_3(%arg0: i32) -> (i32, i32) {
    %c0_i32 = arith.constant 0 : i32
    %c0_i32_0 = arith.constant 0 : i32
    %c0_i32_1 = arith.constant 0 : i32
    return %c0_i32, %c0_i32_0 : i32, i32
  }
  func.func @transform_4(%arg0: i32) -> (i32, i32) {
    %c0_i32 = arith.constant 0 : i32
    %c0_i32_0 = arith.constant 0 : i32
    %c0_i32_1 = arith.constant 0 : i32
    return %c0_i32, %c0_i32_0 : i32, i32
  }
  func.func @transform_5(%arg0: i32) -> (i32, i32) {
    %c0_i32 = arith.constant 0 : i32
    %c0_i32_0 = arith.constant 0 : i32
    return %arg0, %c0_i32 : i32, i32
  }
}

module attributes {stable_mosaic.version = 11 : i64} {
  func.func @kernel(%arg0: i32, %arg1: memref<8x128xbf16, #tpu.memory_space<vmem>>, %arg2: memref<128x128xbf16, #tpu.memory_space<vmem>>, %arg3: memref<1x128xf32, #tpu.memory_space<vmem>>, %arg4: memref<128x128xbf16, #tpu.memory_space<vmem>>, %arg5: memref<1x128xf32, #tpu.memory_space<vmem>>, %arg6: memref<8x128xf32, #tpu.memory_space<vmem>>) attributes {dimension_semantics = [#tpu.dimension_semantics<parallel>], iteration_bounds = array<i64: 2>, scalar_prefetch = 0 : i64, scratch_operands = 0 : i64, tpu.core_type = #tpu.core_type<tc>, window_params = [{transform_indices = @transform_0, window_bounds = array<i64: 8, 128>}, {pipeline_mode = #tpu.pipeline_mode<synchronous>, transform_indices = @transform_1, window_bounds = array<i64: 128, 128>}, {pipeline_mode = #tpu.pipeline_mode<synchronous>, transform_indices = @transform_2, window_bounds = array<i64: 1, 128>}, {pipeline_mode = #tpu.pipeline_mode<synchronous>, transform_indices = @transform_3, window_bounds = array<i64: 128, 128>}, {pipeline_mode = #tpu.pipeline_mode<synchronous>, transform_indices = @transform_4, window_bounds = array<i64: 1, 128>}, {transform_indices = @transform_5, window_bounds = array<i64: 8, 128>}]} {
    %c0 = arith.constant 0 : index
    %c0_0 = arith.constant 0 : index
    %0 = vector.load %arg1[%c0, %c0_0] : memref<8x128xbf16, #tpu.memory_space<vmem>>, vector<8x128xbf16>
    %c0_1 = arith.constant 0 : index
    %c0_2 = arith.constant 0 : index
    %1 = vector.load %arg2[%c0_1, %c0_2] : memref<128x128xbf16, #tpu.memory_space<vmem>>, vector<128x128xbf16>
    %cst = arith.constant dense<0.000000e+00> : vector<8x128xf32>
    %2 = tpu.matmul %0, %1, %cst {dimension_numbers = #tpu.dot_dimension_numbers<[1], [0], [0], [1], [0, 0, 1, 1], [], []>} : vector<8x128xbf16>, vector<128x128xbf16>, vector<8x128xf32> -> vector<8x128xf32>
    %c0_3 = arith.constant 0 : index
    %c0_4 = arith.constant 0 : index
    %3 = vector.load %arg3[%c0_3, %c0_4] : memref<1x128xf32, #tpu.memory_space<vmem>>, vector<1x128xf32>
    %4 = vector.broadcast %3 : vector<1x128xf32> to vector<8x128xf32>
    %5 = arith.addf %2, %4 : vector<8x128xf32>
    %cst_5 = arith.constant 5.000000e-01 : f32
    %6 = vector.broadcast %cst_5 : f32 to vector<8x128xf32>
    %7 = arith.mulf %6, %5 : vector<8x128xf32>
    %cst_6 = arith.constant 4.471500e-02 : f32
    %8 = vector.broadcast %cst_6 : f32 to vector<8x128xf32>
    %9 = arith.mulf %8, %5 : vector<8x128xf32>
    %10 = arith.mulf %9, %5 : vector<8x128xf32>
    %11 = arith.mulf %10, %5 : vector<8x128xf32>
    %12 = arith.addf %5, %11 : vector<8x128xf32>
    %cst_7 = arith.constant 0.797884583 : f32
    %13 = vector.broadcast %cst_7 : f32 to vector<8x128xf32>
    %14 = arith.mulf %13, %12 : vector<8x128xf32>
    %15 = math.tanh %14 : vector<8x128xf32>
    %cst_8 = arith.constant 1.000000e+00 : f32
    %16 = vector.broadcast %cst_8 : f32 to vector<8x128xf32>
    %17 = arith.addf %16, %15 : vector<8x128xf32>
    %18 = arith.mulf %7, %17 : vector<8x128xf32>
    %19 = arith.truncf %18 : vector<8x128xf32> to vector<8x128xbf16>
    %c0_9 = arith.constant 0 : index
    %c0_10 = arith.constant 0 : index
    %20 = vector.load %arg4[%c0_9, %c0_10] : memref<128x128xbf16, #tpu.memory_space<vmem>>, vector<128x128xbf16>
    %cst_11 = arith.constant dense<0.000000e+00> : vector<8x128xf32>
    %21 = tpu.matmul %19, %20, %cst_11 {dimension_numbers = #tpu.dot_dimension_numbers<[1], [0], [0], [1], [0, 0, 1, 1], [], []>} : vector<8x128xbf16>, vector<128x128xbf16>, vector<8x128xf32> -> vector<8x128xf32>
    %c0_12 = arith.constant 0 : index
    %c0_13 = arith.constant 0 : index
    %22 = vector.load %arg5[%c0_12, %c0_13] : memref<1x128xf32, #tpu.memory_space<vmem>>, vector<1x128xf32>
    %23 = vector.broadcast %22 : vector<1x128xf32> to vector<8x128xf32>
    %24 = arith.addf %21, %23 : vector<8x128xf32>
    %c0_14 = arith.constant 0 : index
    %c0_15 = arith.constant 0 : index
    %25 = vector.load %arg6[%c0_14, %c0_15] : memref<8x128xf32, #tpu.memory_space<vmem>>, vector<8x128xf32>
    tpu.vector_store %arg6[%c0_14, %c0_15], %24 {strides = array<i32>} : memref<8x128xf32, #tpu.memory_space<vmem>>, vector<8x128xf32>,
    return
  }
  func.func @transform_0(%arg0: i32) -> (i32, i32) {
    %c0_i32 = arith.constant 0 : i32
    %c0_i32_0 = arith.constant 0 : i32
    return %arg0, %c0_i32 : i32, i32
  }
  func.func @transform_1(%arg0: i32) -> (i32, i32) {
    %c0_i32 = arith.constant 0 : i32
    %c0_i32_0 = arith.constant 0 : i32
    %c0_i32_1 = arith.constant 0 : i32
    return %c0_i32, %c0_i32_0 : i32, i32
  }
  func.func @transform_2(%arg0: i32) -> (i32, i32) {
    %c0_i32 = arith.constant 0 : i32
    %c0_i32_0 = arith.constant 0 : i32
    %c0_i32_1 = arith.constant 0 : i32
    return %c0_i32, %c0_i32_0 : i32, i32
  }
  func.func @transform_3(%arg0: i32) -> (i32, i32) {
    %c0_i32 = arith.constant 0 : i32
    %c0_i32_0 = arith.constant 0 : i32
    %c0_i32_1 = arith.constant 0 : i32
    return %c0_i32, %c0_i32_0 : i32, i32
  }
  func.func @transform_4(%arg0: i32) -> (i32, i32) {
    %c0_i32 = arith.constant 0 : i32
    %c0_i32_0 = arith.constant 0 : i32
    %c0_i32_1 = arith.constant 0 : i32
    return %c0_i32, %c0_i32_0 : i32, i32
  }
  func.func @transform_5(%arg0: i32) -> (i32, i32) {
    %c0_i32 = arith.constant 0 : i32
    %c0_i32_0 = arith.constant 0 : i32
    return %arg0, %c0_i32 : i32, i32
  }
}

</mosaic_0001>

<llo_original>
// kernel: tpu_custom_call.1
$region0: #{tpu_custom_call.1}
  #allocation0 [shape = 'u32[]', space=smem, size = 0x4, offset = 0x4, fixed_abs, tag = 'smem constant byte address 0x4 - core index']
  #allocation1 [shape = 'u32[72,128]{1,0:T(1,128)}', space=vmem, size = 0x9000, scoped, tag = 'internal scratch']
  %s0 = inlined_call_operand.hbm [shape: bf16[16,128], index: 0, kind: input, shape index: {}]
  %s1 = inlined_call_operand.hbm [shape: bf16[128,128], index: 1, kind: input, shape index: {}]
  %s2 = inlined_call_operand.vmem [shape: f32[1,128], index: 2, kind: input, shape index: {}]
  %s3 = inlined_call_operand.hbm [shape: bf16[128,128], index: 3, kind: input, shape index: {}]
  %s4 = inlined_call_operand.vmem [shape: f32[1,128], index: 4, kind: input, shape index: {}]
  %s5 = inlined_call_operand.hbm [shape: f32[16,128], index: 5, kind: output, shape index: {}]
  %s6 = sld [smem:[#allocation0]]
  $region65: #{tpu_custom_call.1} parent=0
    _
  %s8 = ssub.s32 1, %s6
  %s9 = scalar_select 0, %s8, %s6
  $region1: #{tpu_custom_call.1} parent=0
    #allocation2 [shape = 'u8[4096]{0}', space=vmem, size = 0x1000, scoped, tag = 'input window, operand 0']
    #allocation3 [shape = 's32[2]{0}', space=sflag, size = 0x8, scoped, tag = 'scoped memory for tpu_custom_call.1']
    #allocation4 [shape = 's32[2]{0}', space=sflag, size = 0x8, scoped, tag = 'scoped memory for tpu_custom_call.1']
    #allocation5 [shape = 'u8[32768]{0}', space=vmem, size = 0x8000, scoped, tag = 'input window, operand 1, single buffered']
    #allocation6 [shape = 's32[1]{0}', space=sflag, size = 0x4, scoped, tag = 'scoped memory for tpu_custom_call.1']
    #allocation7 [shape = 'u8[32768]{0}', space=vmem, size = 0x8000, scoped, tag = 'input window, operand 3, single buffered']
    #allocation8 [shape = 'u8[8192]{0}', space=vmem, size = 0x2000, scoped, tag = 'output window, operand 0']
    %10 = vsyncpa [#allocation3], 0
    %s11 = scalar_lea.sflag [#allocation3], 1
    %12 = vsyncpa %s11, 0
    %13 = vsyncpa [#allocation6], 0
    %14 = vsyncpa [#allocation4], 0
    %s15 = scalar_lea.sflag [#allocation4], 1
    %16 = vsyncpa %s15, 0
    loop: start=0, step=1, limit=4
    $region2: #{tpu_custom_call.1} parent=1 // loop_pre_header
      _
    $region3: #{tpu_custom_call.1} parent=1 // loop_header
      %s18 = sphi 0, %s22
      %p19 = scmp.ge.s32.totalorder %s18, 4
      %s28 = sphi 0, %s30
      %s31 = sphi 0, %s28
      %s32 = sphi 0, %s31
      %s48 = sphi 0, %s32
      %s52 = sphi 0, %s52
      %s54 = sphi 0, %s52
      %s55 = sphi 0, %s54
      %s69 = sphi 0, %s55
      %s73 = sphi 0, %s73
      %s75 = sphi 0, %s73
      %s76 = sphi 0, %s75
      %s90 = sphi 0, %s76
      %s94 = sphi 0, %s94
      %s96 = sphi 0, %s94
      %s97 = sphi 0, %s96
      %s111 = sphi 0, %s97
      %s115 = sphi 0, %s115
      %s117 = sphi 0, %s115
      %s118 = sphi 0, %s117
      %s132 = sphi 0, %s118
      %s138 = sphi 0, %s140
      %s141 = sphi 0, %s138
      %s142 = sphi 0, %s141
      %s158 = sphi 0, %s142
    $region4: #{tpu_custom_call.1} parent=1 // loop_header_branch
      %21 = sbr.rel (%p19) target = $region8
    $region5: #{tpu_custom_call.1} parent=1 // loop_body
      %s23 = ssub.s32 %s18, 1
      %s24 = ssub.s32 %s18, 2
      %s25 = sadd.s32 %s18, 1
      %s26 = ssub.s32 %s18, %s25
      %p27 = scmp.eq.s32.totalorder %s26, 0
      %s29 = sadd.s32 %s28, 1
      %s30 = scalar_select %p27, %s28, %s29
      %p33 = pneg %p27
      %p34 = scmp.eq.s32.totalorder %s18, 1
      %p35 = por %p33, %p34
      %p36 = scmp.ne.s32.totalorder %s28, %s31
      %p37 = scmp.eq.s32.totalorder %s18, 0
      %p38 = por %p36, %p37
      %p39 = scmp.ne.s32.totalorder %s28, %s31
      %p40 = scmp.eq.s32.totalorder %s23, 1
      %p41 = por %p39, %p40
      %p42 = scmp.ne.s32.totalorder %s31, %s32
      %p43 = scmp.eq.s32.totalorder %s23, 0
      %p44 = por %p42, %p43
      %p45 = scmp.ne.s32.totalorder %s31, %s32
      %p46 = scmp.eq.s32.totalorder %s24, 1
      %p47 = por %p45, %p46
      %p49 = scmp.ne.s32.totalorder %s32, %s48
      %p50 = scmp.eq.s32.totalorder %s24, 0
      %p51 = por %p49, %p50
      %s53 = sadd.s32 %s52, 1
      %p56 = scmp.eq.s32.totalorder %s18, 1
      %p57 = scmp.ne.s32.totalorder %s52, %s54
      %p58 = scmp.eq.s32.totalorder %s18, 0
      %p59 = por %p57, %p58
      %p60 = scmp.ne.s32.totalorder %s52, %s54
      %p61 = scmp.eq.s32.totalorder %s23, 1
      %p62 = por %p60, %p61
      %p63 = scmp.ne.s32.totalorder %s54, %s55
      %p64 = scmp.eq.s32.totalorder %s23, 0
      %p65 = por %p63, %p64
      %p66 = scmp.ne.s32.totalorder %s54, %s55
      %p67 = scmp.eq.s32.totalorder %s24, 1
      %p68 = por %p66, %p67
      %p70 = scmp.ne.s32.totalorder %s55, %s69
      %p71 = scmp.eq.s32.totalorder %s24, 0
      %p72 = por %p70, %p71
      %s74 = sadd.s32 %s73, 1
      %p77 = scmp.eq.s32.totalorder %s18, 1
      %p78 = scmp.ne.s32.totalorder %s73, %s75
      %p79 = scmp.eq.s32.totalorder %s18, 0
      %p80 = por %p78, %p79
      %p81 = scmp.ne.s32.totalorder %s73, %s75
      %p82 = scmp.eq.s32.totalorder %s23, 1
      %p83 = por %p81, %p82
      %p84 = scmp.ne.s32.totalorder %s75, %s76
      %p85 = scmp.eq.s32.totalorder %s23, 0
      %p86 = por %p84, %p85
      %p87 = scmp.ne.s32.totalorder %s75, %s76
      %p88 = scmp.eq.s32.totalorder %s24, 1
      %p89 = por %p87, %p88
      %p91 = scmp.ne.s32.totalorder %s76, %s90
      %p92 = scmp.eq.s32.totalorder %s24, 0
      %p93 = por %p91, %p92
      %s95 = sadd.s32 %s94, 1
      %p98 = scmp.eq.s32.totalorder %s18, 1
      %p99 = scmp.ne.s32.totalorder %s94, %s96
      %p100 = scmp.eq.s32.totalorder %s18, 0
      %p101 = por %p99, %p100
      %p102 = scmp.ne.s32.totalorder %s94, %s96
      %p103 = scmp.eq.s32.totalorder %s23, 1
      %p104 = por %p102, %p103
      %p105 = scmp.ne.s32.totalorder %s96, %s97
      %p106 = scmp.eq.s32.totalorder %s23, 0
      %p107 = por %p105, %p106
      %p108 = scmp.ne.s32.totalorder %s96, %s97
      %p109 = scmp.eq.s32.totalorder %s24, 1
      %p110 = por %p108, %p109
      %p112 = scmp.ne.s32.totalorder %s97, %s111
      %p113 = scmp.eq.s32.totalorder %s24, 0
      %p114 = por %p112, %p113
      %s116 = sadd.s32 %s115, 1
      %p119 = scmp.eq.s32.totalorder %s18, 1
      %p120 = scmp.ne.s32.totalorder %s115, %s117
      %p121 = scmp.eq.s32.totalorder %s18, 0
      %p122 = por %p120, %p121
      %p123 = scmp.ne.s32.totalorder %s115, %s117
      %p124 = scmp.eq.s32.totalorder %s23, 1
      %p125 = por %p123, %p124
      %p126 = scmp.ne.s32.totalorder %s117, %s118
      %p127 = scmp.eq.s32.totalorder %s23, 0
      %p128 = por %p126, %p127
      %p129 = scmp.ne.s32.totalorder %s117, %s118
      %p130 = scmp.eq.s32.totalorder %s24, 1
      %p131 = por %p129, %p130
      %p133 = scmp.ne.s32.totalorder %s118, %s132
      %p134 = scmp.eq.s32.totalorder %s24, 0
      %p135 = por %p133, %p134
      %s136 = ssub.s32 %s18, %s25
      %p137 = scmp.eq.s32.totalorder %s136, 0
      %s139 = sadd.s32 %s138, 1
      %s140 = scalar_select %p137, %s138, %s139
      %p143 = pneg %p137
      %p144 = scmp.eq.s32.totalorder %s18, 1
      %p145 = por %p143, %p144
      %p146 = scmp.ne.s32.totalorder %s138, %s141
      %p147 = scmp.eq.s32.totalorder %s18, 0
      %p148 = por %p146, %p147
      %p149 = scmp.ne.s32.totalorder %s138, %s141
      %p150 = scmp.eq.s32.totalorder %s23, 1
      %p151 = por %p149, %p150
      %p152 = scmp.ne.s32.totalorder %s141, %s142
      %p153 = scmp.eq.s32.totalorder %s23, 0
      %p154 = por %p152, %p153
      %p155 = scmp.ne.s32.totalorder %s141, %s142
      %p156 = scmp.eq.s32.totalorder %s24, 1
      %p157 = por %p155, %p156
      %p159 = scmp.ne.s32.totalorder %s142, %s158
      %p160 = scmp.eq.s32.totalorder %s24, 0
      %p161 = por %p159, %p160
      %p162 = scmp.le.s32.totalorder 1, %s18
      %p163 = scmp.lt.s32.totalorder %s18, 3
      %p164 = pnand %p162, %p163
      %p165 = pneg %p164
      // Predicated region
      $region9: #{tpu_custom_call.1} parent=5 // pred_check
        _
      $region10: #{tpu_custom_call.1} parent=5 // pred_check_branch
        %167 = sbr.rel (%p164) target = $region12
      $region11: #{tpu_custom_call.1} parent=5 // pred_region
        %s168 = ssub.s32 %s18, 1
        // Predicated region
        $region13: #{tpu_custom_call.1} parent=11 // pred_check
          %p169 = pneg %p65
        $region14: #{tpu_custom_call.1} parent=11 // pred_check_branch
          %171 = sbr.rel (%p169) target = $region16
        $region15: #{tpu_custom_call.1} parent=11 // pred_region
          %173 = vsyncadd [#allocation6], 0
          %s174 = sshll.u32 %s1, 4
          %s175 = int_to_ptr.hbm [resolvable:$true] %s174
          %s176 = sshll.u32 [#allocation5], 4
          %s177 = int_to_ptr.vmem [resolvable:$true] %s176
          %182 = dma.hbm_to_vmem [thread:$0]  %s175, 1024, %s177, [#allocation6], 64, 64, 4
        $region16: #{tpu_custom_call.1} parent=11 // pred_fallthru
          _
        // Predicated region
        $region17: #{tpu_custom_call.1} parent=11 // pred_check
          %p183 = pneg %p86
        $region18: #{tpu_custom_call.1} parent=11 // pred_check_branch
          %185 = sbr.rel (%p183) target = $region20
        $region19: #{tpu_custom_call.1} parent=11 // pred_region
          _
        $region20: #{tpu_custom_call.1} parent=11 // pred_fallthru
          _
        // Predicated region
        $region21: #{tpu_custom_call.1} parent=11 // pred_check
          %p186 = pneg %p107
        $region22: #{tpu_custom_call.1} parent=11 // pred_check_branch
          %188 = sbr.rel (%p186) target = $region24
        $region23: #{tpu_custom_call.1} parent=11 // pred_region
          %190 = vsyncadd [#allocation6], 0
          %s191 = sshll.u32 %s3, 4
          %s192 = int_to_ptr.hbm [resolvable:$true] %s191
          %s193 = sshll.u32 [#allocation7], 4
          %s194 = int_to_ptr.vmem [resolvable:$true] %s193
          %199 = dma.hbm_to_vmem [thread:$0]  %s192, 1024, %s194, [#allocation6], 64, 64, 4
        $region24: #{tpu_custom_call.1} parent=11 // pred_fallthru
          _
        // Predicated region
        $region25: #{tpu_custom_call.1} parent=11 // pred_check
          %p200 = pneg %p128
        $region26: #{tpu_custom_call.1} parent=11 // pred_check_branch
          %202 = sbr.rel (%p200) target = $region28
        $region27: #{tpu_custom_call.1} parent=11 // pred_region
          _
        $region28: #{tpu_custom_call.1} parent=11 // pred_fallthru
          _
      $region12: #{tpu_custom_call.1} parent=5 // pred_fallthru
        _
      %p203 = scmp.lt.s32.totalorder %s18, 2
      // Predicated region
      $region29: #{tpu_custom_call.1} parent=5 // pred_check
        %p204 = pneg %p203
      $region30: #{tpu_custom_call.1} parent=5 // pred_check_branch
        %206 = sbr.rel (%p204) target = $region32
      $region31: #{tpu_custom_call.1} parent=5 // pred_region
        // Predicated region
        $region33: #{tpu_custom_call.1} parent=31 // pred_check
          %p207 = pneg %p38
        $region34: #{tpu_custom_call.1} parent=31 // pred_check_branch
          %209 = sbr.rel (%p207) target = $region36
        $region35: #{tpu_custom_call.1} parent=31 // pred_region
          %s210 = sand.u32 %s28, 1
          %s211 = scalar_lea.sflag [#allocation3], %s210
          %s212 = sand.u32 %s28, 1
          %s213 = smul.addr %s212, 4
          %s214 = scalar_lea.vmem [#allocation2], %s213
          %216 = vsyncadd %s211, 0
          %s217 = smul.addr %s18, 4
          %s218 = scalar_lea.hbm %s0, %s217
          %s220 = sshll.u32 %s218, 4
          %s221 = int_to_ptr.hbm [resolvable:$true] %s220
          %s222 = sshll.u32 %s214, 4
          %s223 = int_to_ptr.vmem [resolvable:$true] %s222
          %225 = dma.hbm_to_vmem [thread:$0]  %s221, 64, %s223, %s211
        $region36: #{tpu_custom_call.1} parent=31 // pred_fallthru
          _
      $region32: #{tpu_custom_call.1} parent=5 // pred_fallthru
        _
      %p226 = scmp.le.s32.totalorder 1, %s18
      %p227 = scmp.lt.s32.totalorder %s18, 3
      %p228 = pnand %p226, %p227
      %p229 = pneg %p228
      // Predicated region
      $region37: #{tpu_custom_call.1} parent=5 // pred_check
        _
      $region38: #{tpu_custom_call.1} parent=5 // pred_check_branch
        %231 = sbr.rel (%p228) target = $region40
      $region39: #{tpu_custom_call.1} parent=5 // pred_region
        %s232 = ssub.s32 %s18, 1
        %s233 = sand.u32 %s31, 1
        %s234 = scalar_lea.sflag [#allocation3], %s233
        %s235 = sand.u32 %s31, 1
        %s236 = smul.addr %s235, 4
        %s237 = scalar_lea.vmem [#allocation2], %s236
        // Predicated region
        $region41: #{tpu_custom_call.1} parent=39 // pred_check
          %p238 = pneg %p44
        $region42: #{tpu_custom_call.1} parent=39 // pred_check_branch
          %240 = sbr.rel (%p238) target = $region44
        $region43: #{tpu_custom_call.1} parent=39 // pred_region
          %242 = dma.done %s234, 64
        $region44: #{tpu_custom_call.1} parent=39 // pred_fallthru
          _
        // Predicated region
        $region45: #{tpu_custom_call.1} parent=39 // pred_check
          %p243 = pneg %p65
        $region46: #{tpu_custom_call.1} parent=39 // pred_check_branch
          %245 = sbr.rel (%p243) target = $region48
        $region47: #{tpu_custom_call.1} parent=39 // pred_region
          %247 = dma.done [#allocation6], 1024
        $region48: #{tpu_custom_call.1} parent=39 // pred_fallthru
          _
        // Predicated region
        $region49: #{tpu_custom_call.1} parent=39 // pred_check
          %p248 = pneg %p107
        $region50: #{tpu_custom_call.1} parent=39 // pred_check_branch
          %250 = sbr.rel (%p248) target = $region52
        $region51: #{tpu_custom_call.1} parent=39 // pred_region
          %252 = dma.done [#allocation6], 1024
        $region52: #{tpu_custom_call.1} parent=39 // pred_fallthru
          _
        %s253 = sand.u32 %s31, 1
        %s254 = scalar_lea.sflag [#allocation3], %s253
        %s255 = sand.u32 %s31, 1
        %s256 = smul.addr %s255, 4
        %s257 = scalar_lea.vmem [#allocation2], %s256
        %p258 = pneg %p44
        %p259 = pneg %p41
        %p260 = pneg %p65
        %p261 = pneg %p62
        %p262 = pneg %p86
        %p263 = pneg %p83
        %p264 = pneg %p107
        %p265 = pneg %p104
        %p266 = pneg %p128
        %p267 = pneg %p125
        %p268 = pneg %p154
        %p269 = pneg %p151
        %s270 = sand.u32 %s141, 1
        %s271 = scalar_lea.sflag [#allocation4], %s270
        %s272 = sand.u32 %s141, 1
        %s273 = smul.addr %s272, 8
        %s274 = scalar_lea.vmem [#allocation8], %s273
        %v275 = vld [vmem:[%s237] sm:$0xf]
        %v276 = vld [vmem:[#allocation5] sm:$0xf]
        %v277 = vld [vmem:[#allocation5 + $0x4] sm:$0xf]
        %v278 = vld [vmem:[#allocation5 + $0x8] sm:$0xf]
        %v279 = vld [vmem:[#allocation5 + $0xc] sm:$0xf]
        %v280 = vld [vmem:[#allocation5 + $0x10] sm:$0xf]
        %v281 = vld [vmem:[#allocation5 + $0x14] sm:$0xf]
        %v282 = vld [vmem:[#allocation5 + $0x18] sm:$0xf]
        %v283 = vld [vmem:[#allocation5 + $0x1c] sm:$0xf]
        %v284 = vld [vmem:[#allocation5 + $0x20] sm:$0xf]
        %v285 = vld [vmem:[#allocation5 + $0x24] sm:$0xf]
        %v286 = vld [vmem:[#allocation5 + $0x28] sm:$0xf]
        %v287 = vld [vmem:[#allocation5 + $0x2c] sm:$0xf]
        %v288 = vld [vmem:[#allocation5 + $0x30] sm:$0xf]
        %v289 = vld [vmem:[#allocation5 + $0x34] sm:$0xf]
        %v290 = vld [vmem:[#allocation5 + $0x38] sm:$0xf]
        %v291 = vld [vmem:[#allocation5 + $0x3c] sm:$0xf]
        %v292 = vld [vmem:[%s2] sm:$0x1]
        %v294 = vperm.slane %v292, 0
        %v312 = vunpack.c.l.b16 %v276
        %v313 = vunpack.c.l.b16 %v277
        %v314 = vunpack.c.l.b16 %v278
        %v315 = vunpack.c.l.b16 %v279
        %v316 = vunpack.c.l.b16 %v280
        %v317 = vunpack.c.l.b16 %v281
        %v318 = vunpack.c.l.b16 %v282
        %v319 = vunpack.c.l.b16 %v283
        %v320 = vunpack.c.l.b16 %v284
        %v321 = vunpack.c.l.b16 %v285
        %v322 = vunpack.c.l.b16 %v286
        %v323 = vunpack.c.l.b16 %v287
        %v324 = vunpack.c.l.b16 %v288
        %v325 = vunpack.c.l.b16 %v289
        %v326 = vunpack.c.l.b16 %v290
        %v327 = vunpack.c.l.b16 %v291
        %v328 = vpack.c.b16 %v313, %v312
        %v329 = vpack.c.b16 %v315, %v314
        %v330 = vpack.c.b16 %v317, %v316
        %v331 = vpack.c.b16 %v319, %v318
        %v332 = vpack.c.b16 %v321, %v320
        %v333 = vpack.c.b16 %v323, %v322
        %v334 = vpack.c.b16 %v325, %v324
        %v335 = vpack.c.b16 %v327, %v326
        %344 = vmatpush.bf16.msra.mxu0 %v335
        %345 = vmatpush.bf16.msra.mxu0 %v334
        %346 = vmatpush.bf16.msra.mxu0 %v333
        %347 = vmatpush.bf16.msra.mxu0 %v332
        %348 = vmatpush.bf16.msra.mxu0 %v331
        %349 = vmatpush.bf16.msra.mxu0 %v330
        %350 = vmatpush.bf16.msra.mxu0 %v329
        %351 = vmatpush.bf16.msra.mxu0 %v328
        %352 = vmatmul.bf16.gmra.mxu0 %v275
        %v353 = vpop.f32.mrf.mxu0
        %v354 = vadd.f32 %v294, %v353
        %v355 = vpop.f32.mrf.mxu0
        %356 = vdwg.mxu0
        %v357 = vmul.f32 %v354, 0.5
        %v358 = vmul.f32 %v354, 0.044715
        %v359 = vmul.f32 %v358, %v354
        %v360 = vmul.f32 %v359, %v354
        %v361 = vadd.f32 %v354, %v360
        %v362 = vmul.f32 %v361, 0.7978846
        %v363 = vtanh.pop %v362
        %v364 = vadd.f32 %v363, 1.0
        %v365 = vmul.f32 %v357, %v364
        %v366 = vpack.c.bf16 %v365, %v365
        %v367 = vld [vmem:[#allocation7] sm:$0xf]
        %v368 = vld [vmem:[#allocation7 + $0x4] sm:$0xf]
        %v369 = vld [vmem:[#allocation7 + $0x8] sm:$0xf]
        %v370 = vld [vmem:[#allocation7 + $0xc] sm:$0xf]
        %v371 = vld [vmem:[#allocation7 + $0x10] sm:$0xf]
        %v372 = vld [vmem:[#allocation7 + $0x14] sm:$0xf]
        %v373 = vld [vmem:[#allocation7 + $0x18] sm:$0xf]
        %v374 = vld [vmem:[#allocation7 + $0x1c] sm:$0xf]
        %v375 = vld [vmem:[#allocation7 + $0x20] sm:$0xf]
        %v376 = vld [vmem:[#allocation7 + $0x24] sm:$0xf]
        %v377 = vld [vmem:[#allocation7 + $0x28] sm:$0xf]
        %v378 = vld [vmem:[#allocation7 + $0x2c] sm:$0xf]
        %v379 = vld [vmem:[#allocation7 + $0x30] sm:$0xf]
        %v380 = vld [vmem:[#allocation7 + $0x34] sm:$0xf]
        %v381 = vld [vmem:[#allocation7 + $0x38] sm:$0xf]
        %v382 = vld [vmem:[#allocation7 + $0x3c] sm:$0xf]
        %v383 = vld [vmem:[%s4] sm:$0x1]
        %v385 = vperm.slane %v383, 0
        %v403 = vunpack.c.l.b16 %v367
        %v404 = vunpack.c.l.b16 %v368
        %v405 = vunpack.c.l.b16 %v369
        %v406 = vunpack.c.l.b16 %v370
        %v407 = vunpack.c.l.b16 %v371
        %v408 = vunpack.c.l.b16 %v372
        %v409 = vunpack.c.l.b16 %v373
        %v410 = vunpack.c.l.b16 %v374
        %v411 = vunpack.c.l.b16 %v375
        %v412 = vunpack.c.l.b16 %v376
        %v413 = vunpack.c.l.b16 %v377
        %v414 = vunpack.c.l.b16 %v378
        %v415 = vunpack.c.l.b16 %v379
        %v416 = vunpack.c.l.b16 %v380
        %v417 = vunpack.c.l.b16 %v381
        %v418 = vunpack.c.l.b16 %v382
        %v419 = vpack.c.b16 %v404, %v403
        %v420 = vpack.c.b16 %v406, %v405
        %v421 = vpack.c.b16 %v408, %v407
        %v422 = vpack.c.b16 %v410, %v409
        %v423 = vpack.c.b16 %v412, %v411
        %v424 = vpack.c.b16 %v414, %v413
        %v425 = vpack.c.b16 %v416, %v415
        %v426 = vpack.c.b16 %v418, %v417
        %435 = vmatpush.bf16.msra.mxu0 %v426
        %436 = vmatpush.bf16.msra.mxu0 %v425
        %437 = vmatpush.bf16.msra.mxu0 %v424
        %438 = vmatpush.bf16.msra.mxu0 %v423
        %439 = vmatpush.bf16.msra.mxu0 %v422
        %440 = vmatpush.bf16.msra.mxu0 %v421
        %441 = vmatpush.bf16.msra.mxu0 %v420
        %442 = vmatpush.bf16.msra.mxu0 %v419
        %443 = vmatmul.bf16.gmra.mxu0 %v366
        %v444 = vpop.f32.mrf.mxu0
        %v445 = vadd.f32 %v385, %v444
        %v446 = vpop.f32.mrf.mxu0
        %447 = vdwg.mxu0
        %448 = vst [vmem:[%s274] sm:$0xff] %v445
        %s449 = sand.u32 %s141, 1
        %s450 = scalar_lea.sflag [#allocation4], %s449
        %s451 = sand.u32 %s141, 1
        %s452 = smul.addr %s451, 8
        %s453 = scalar_lea.vmem [#allocation8], %s452
        // Predicated region
        $region53: #{tpu_custom_call.1} parent=39 // pred_check
          %p454 = pneg %p151
        $region54: #{tpu_custom_call.1} parent=39 // pred_check_branch
          %456 = sbr.rel (%p454) target = $region56
        $region55: #{tpu_custom_call.1} parent=39 // pred_region
          %458 = vsyncadd %s450, 0
          %s459 = smul.addr %s23, 8
          %s460 = scalar_lea.hbm %s5, %s459
          %s462 = sshll.u32 %s453, 4
          %s463 = int_to_ptr.vmem [resolvable:$true] %s462
          %s464 = sshll.u32 %s460, 4
          %s465 = int_to_ptr.hbm [resolvable:$true] %s464
          %467 = dma.vmem_to_hbm [thread:$0]  %s463, 128, %s465, %s450
        $region56: #{tpu_custom_call.1} parent=39 // pred_fallthru
          _
      $region40: #{tpu_custom_call.1} parent=5 // pred_fallthru
        _
      %p468 = scmp.le.s32.totalorder 2, %s18
      // Predicated region
      $region57: #{tpu_custom_call.1} parent=5 // pred_check
        %p469 = pneg %p468
      $region58: #{tpu_custom_call.1} parent=5 // pred_check_branch
        %471 = sbr.rel (%p469) target = $region60
      $region59: #{tpu_custom_call.1} parent=5 // pred_region
        %s472 = ssub.s32 %s18, 2
        // Predicated region
        $region61: #{tpu_custom_call.1} parent=59 // pred_check
          %p473 = pneg %p157
        $region62: #{tpu_custom_call.1} parent=59 // pred_check_branch
          %475 = sbr.rel (%p473) target = $region64
        $region63: #{tpu_custom_call.1} parent=59 // pred_region
          %s476 = sand.u32 %s142, 1
          %s477 = scalar_lea.sflag [#allocation4], %s476
          %s478 = sand.u32 %s142, 1
          %s479 = smul.addr %s478, 8
          %s480 = scalar_lea.vmem [#allocation8], %s479
          %482 = dma.done %s477, 128
        $region64: #{tpu_custom_call.1} parent=59 // pred_fallthru
          _
      $region60: #{tpu_custom_call.1} parent=5 // pred_fallthru
        _
    $region6: #{tpu_custom_call.1} parent=1 // loop_footer
      %s22 = sadd.s32 1, %s18
    $region7: #{tpu_custom_call.1} parent=1 // loop_footer_branch
      %17 = sbr.rel target = $region3
    $region8: #{tpu_custom_call.1} parent=1 // loop_exit
      _
    %483 = vsyncpa [#allocation3], 1
    %s484 = scalar_lea.sflag [#allocation3], 1
    %485 = vsyncpa %s484, 1
    %486 = vsyncpa [#allocation6], 1
    %487 = vsyncpa [#allocation4], 1
    %s488 = scalar_lea.sflag [#allocation4], 1
    %489 = vsyncpa %s488, 1

// kernel: tpu_custom_call.1
$region0: #{tpu_custom_call.1}
  #allocation0 [shape = 'u32[]', space=smem, size = 0x4, offset = 0x4, fixed_abs, tag = 'smem constant byte address 0x4 - core index']
  #allocation1 [shape = 'u32[72,128]{1,0:T(1,128)}', space=vmem, size = 0x9000, scoped, tag = 'internal scratch']
  %s0 = inlined_call_operand.hbm [shape: bf16[16,128], index: 0, kind: input, shape index: {}]
  %s1 = inlined_call_operand.hbm [shape: bf16[128,128], index: 1, kind: input, shape index: {}]
  %s2 = inlined_call_operand.vmem [shape: f32[1,128], index: 2, kind: input, shape index: {}]
  %s3 = inlined_call_operand.hbm [shape: bf16[128,128], index: 3, kind: input, shape index: {}]
  %s4 = inlined_call_operand.vmem [shape: f32[1,128], index: 4, kind: input, shape index: {}]
  %s5 = inlined_call_operand.hbm [shape: f32[16,128], index: 5, kind: output, shape index: {}]
  %s6 = sld [smem:[#allocation0]]
  $region65: #{tpu_custom_call.1} parent=0
    _
  %s8 = ssub.s32 1, %s6
  %s9 = scalar_select 0, %s8, %s6
  $region1: #{tpu_custom_call.1} parent=0
    #allocation2 [shape = 'u8[4096]{0}', space=vmem, size = 0x1000, scoped, tag = 'input window, operand 0']
    #allocation3 [shape = 's32[2]{0}', space=sflag, size = 0x8, scoped, tag = 'scoped memory for tpu_custom_call.1']
    #allocation4 [shape = 's32[2]{0}', space=sflag, size = 0x8, scoped, tag = 'scoped memory for tpu_custom_call.1']
    #allocation5 [shape = 'u8[32768]{0}', space=vmem, size = 0x8000, scoped, tag = 'input window, operand 1, single buffered']
    #allocation6 [shape = 's32[1]{0}', space=sflag, size = 0x4, scoped, tag = 'scoped memory for tpu_custom_call.1']
    #allocation7 [shape = 'u8[32768]{0}', space=vmem, size = 0x8000, scoped, tag = 'input window, operand 3, single buffered']
    #allocation8 [shape = 'u8[8192]{0}', space=vmem, size = 0x2000, scoped, tag = 'output window, operand 0']
    %10 = vsyncpa [#allocation3], 0
    %s11 = scalar_lea.sflag [#allocation3], 1
    %12 = vsyncpa %s11, 0
    %13 = vsyncpa [#allocation6], 0
    %14 = vsyncpa [#allocation4], 0
    %s15 = scalar_lea.sflag [#allocation4], 1
    %16 = vsyncpa %s15, 0
    loop: start=0, step=1, limit=4
    $region2: #{tpu_custom_call.1} parent=1 // loop_pre_header
      _
    $region3: #{tpu_custom_call.1} parent=1 // loop_header
      %s18 = sphi 0, %s22
      %p19 = scmp.ge.s32.totalorder %s18, 4
      %s28 = sphi 0, %s30
      %s31 = sphi 0, %s28
      %s32 = sphi 0, %s31
      %s48 = sphi 0, %s32
      %s52 = sphi 0, %s52
      %s54 = sphi 0, %s52
      %s55 = sphi 0, %s54
      %s69 = sphi 0, %s55
      %s73 = sphi 0, %s73
      %s75 = sphi 0, %s73
      %s76 = sphi 0, %s75
      %s90 = sphi 0, %s76
      %s94 = sphi 0, %s94
      %s96 = sphi 0, %s94
      %s97 = sphi 0, %s96
      %s111 = sphi 0, %s97
      %s115 = sphi 0, %s115
      %s117 = sphi 0, %s115
      %s118 = sphi 0, %s117
      %s132 = sphi 0, %s118
      %s138 = sphi 0, %s140
      %s141 = sphi 0, %s138
      %s142 = sphi 0, %s141
      %s158 = sphi 0, %s142
    $region4: #{tpu_custom_call.1} parent=1 // loop_header_branch
      %21 = sbr.rel (%p19) target = $region8
    $region5: #{tpu_custom_call.1} parent=1 // loop_body
      %s23 = ssub.s32 %s18, 1
      %s24 = ssub.s32 %s18, 2
      %s25 = sadd.s32 %s18, 1
      %s26 = ssub.s32 %s18, %s25
      %p27 = scmp.eq.s32.totalorder %s26, 0
      %s29 = sadd.s32 %s28, 1
      %s30 = scalar_select %p27, %s28, %s29
      %p33 = pneg %p27
      %p34 = scmp.eq.s32.totalorder %s18, 1
      %p35 = por %p33, %p34
      %p36 = scmp.ne.s32.totalorder %s28, %s31
      %p37 = scmp.eq.s32.totalorder %s18, 0
      %p38 = por %p36, %p37
      %p39 = scmp.ne.s32.totalorder %s28, %s31
      %p40 = scmp.eq.s32.totalorder %s23, 1
      %p41 = por %p39, %p40
      %p42 = scmp.ne.s32.totalorder %s31, %s32
      %p43 = scmp.eq.s32.totalorder %s23, 0
      %p44 = por %p42, %p43
      %p45 = scmp.ne.s32.totalorder %s31, %s32
      %p46 = scmp.eq.s32.totalorder %s24, 1
      %p47 = por %p45, %p46
      %p49 = scmp.ne.s32.totalorder %s32, %s48
      %p50 = scmp.eq.s32.totalorder %s24, 0
      %p51 = por %p49, %p50
      %s53 = sadd.s32 %s52, 1
      %p56 = scmp.eq.s32.totalorder %s18, 1
      %p57 = scmp.ne.s32.totalorder %s52, %s54
      %p58 = scmp.eq.s32.totalorder %s18, 0
      %p59 = por %p57, %p58
      %p60 = scmp.ne.s32.totalorder %s52, %s54
      %p61 = scmp.eq.s32.totalorder %s23, 1
      %p62 = por %p60, %p61
      %p63 = scmp.ne.s32.totalorder %s54, %s55
      %p64 = scmp.eq.s32.totalorder %s23, 0
      %p65 = por %p63, %p64
      %p66 = scmp.ne.s32.totalorder %s54, %s55
      %p67 = scmp.eq.s32.totalorder %s24, 1
      %p68 = por %p66, %p67
      %p70 = scmp.ne.s32.totalorder %s55, %s69
      %p71 = scmp.eq.s32.totalorder %s24, 0
      %p72 = por %p70, %p71
      %s74 = sadd.s32 %s73, 1
      %p77 = scmp.eq.s32.totalorder %s18, 1
      %p78 = scmp.ne.s32.totalorder %s73, %s75
      %p79 = scmp.eq.s32.totalorder %s18, 0
      %p80 = por %p78, %p79
      %p81 = scmp.ne.s32.totalorder %s73, %s75
      %p82 = scmp.eq.s32.totalorder %s23, 1
      %p83 = por %p81, %p82
      %p84 = scmp.ne.s32.totalorder %s75, %s76
      %p85 = scmp.eq.s32.totalorder %s23, 0
      %p86 = por %p84, %p85
      %p87 = scmp.ne.s32.totalorder %s75, %s76
      %p88 = scmp.eq.s32.totalorder %s24, 1
      %p89 = por %p87, %p88
      %p91 = scmp.ne.s32.totalorder %s76, %s90
      %p92 = scmp.eq.s32.totalorder %s24, 0
      %p93 = por %p91, %p92
      %s95 = sadd.s32 %s94, 1
      %p98 = scmp.eq.s32.totalorder %s18, 1
      %p99 = scmp.ne.s32.totalorder %s94, %s96
      %p100 = scmp.eq.s32.totalorder %s18, 0
      %p101 = por %p99, %p100
      %p102 = scmp.ne.s32.totalorder %s94, %s96
      %p103 = scmp.eq.s32.totalorder %s23, 1
      %p104 = por %p102, %p103
      %p105 = scmp.ne.s32.totalorder %s96, %s97
      %p106 = scmp.eq.s32.totalorder %s23, 0
      %p107 = por %p105, %p106
      %p108 = scmp.ne.s32.totalorder %s96, %s97
      %p109 = scmp.eq.s32.totalorder %s24, 1
      %p110 = por %p108, %p109
      %p112 = scmp.ne.s32.totalorder %s97, %s111
      %p113 = scmp.eq.s32.totalorder %s24, 0
      %p114 = por %p112, %p113
      %s116 = sadd.s32 %s115, 1
      %p119 = scmp.eq.s32.totalorder %s18, 1
      %p120 = scmp.ne.s32.totalorder %s115, %s117
      %p121 = scmp.eq.s32.totalorder %s18, 0
      %p122 = por %p120, %p121
      %p123 = scmp.ne.s32.totalorder %s115, %s117
      %p124 = scmp.eq.s32.totalorder %s23, 1
      %p125 = por %p123, %p124
      %p126 = scmp.ne.s32.totalorder %s117, %s118
      %p127 = scmp.eq.s32.totalorder %s23, 0
      %p128 = por %p126, %p127
      %p129 = scmp.ne.s32.totalorder %s117, %s118
      %p130 = scmp.eq.s32.totalorder %s24, 1
      %p131 = por %p129, %p130
      %p133 = scmp.ne.s32.totalorder %s118, %s132
      %p134 = scmp.eq.s32.totalorder %s24, 0
      %p135 = por %p133, %p134
      %s136 = ssub.s32 %s18, %s25
      %p137 = scmp.eq.s32.totalorder %s136, 0
      %s139 = sadd.s32 %s138, 1
      %s140 = scalar_select %p137, %s138, %s139
      %p143 = pneg %p137
      %p144 = scmp.eq.s32.totalorder %s18, 1
      %p145 = por %p143, %p144
      %p146 = scmp.ne.s32.totalorder %s138, %s141
      %p147 = scmp.eq.s32.totalorder %s18, 0
      %p148 = por %p146, %p147
      %p149 = scmp.ne.s32.totalorder %s138, %s141
      %p150 = scmp.eq.s32.totalorder %s23, 1
      %p151 = por %p149, %p150
      %p152 = scmp.ne.s32.totalorder %s141, %s142
      %p153 = scmp.eq.s32.totalorder %s23, 0
      %p154 = por %p152, %p153
      %p155 = scmp.ne.s32.totalorder %s141, %s142
      %p156 = scmp.eq.s32.totalorder %s24, 1
      %p157 = por %p155, %p156
      %p159 = scmp.ne.s32.totalorder %s142, %s158
      %p160 = scmp.eq.s32.totalorder %s24, 0
      %p161 = por %p159, %p160
      %p162 = scmp.le.s32.totalorder 1, %s18
      %p163 = scmp.lt.s32.totalorder %s18, 3
      %p164 = pnand %p162, %p163
      %p165 = pneg %p164
      // Predicated region
      $region9: #{tpu_custom_call.1} parent=5 // pred_check
        _
      $region10: #{tpu_custom_call.1} parent=5 // pred_check_branch
        %167 = sbr.rel (%p164) target = $region12
      $region11: #{tpu_custom_call.1} parent=5 // pred_region
        %s168 = ssub.s32 %s18, 1
        // Predicated region
        $region13: #{tpu_custom_call.1} parent=11 // pred_check
          %p169 = pneg %p65
        $region14: #{tpu_custom_call.1} parent=11 // pred_check_branch
          %171 = sbr.rel (%p169) target = $region16
        $region15: #{tpu_custom_call.1} parent=11 // pred_region
          %173 = vsyncadd [#allocation6], 0
          %s174 = sshll.u32 %s1, 4
          %s175 = int_to_ptr.hbm [resolvable:$true] %s174
          %s176 = sshll.u32 [#allocation5], 4
          %s177 = int_to_ptr.vmem [resolvable:$true] %s176
          %182 = dma.hbm_to_vmem [thread:$0]  %s175, 1024, %s177, [#allocation6], 64, 64, 4
        $region16: #{tpu_custom_call.1} parent=11 // pred_fallthru
          _
        // Predicated region
        $region17: #{tpu_custom_call.1} parent=11 // pred_check
          %p183 = pneg %p86
        $region18: #{tpu_custom_call.1} parent=11 // pred_check_branch
          %185 = sbr.rel (%p183) target = $region20
        $region19: #{tpu_custom_call.1} parent=11 // pred_region
          _
        $region20: #{tpu_custom_call.1} parent=11 // pred_fallthru
          _
        // Predicated region
        $region21: #{tpu_custom_call.1} parent=11 // pred_check
          %p186 = pneg %p107
        $region22: #{tpu_custom_call.1} parent=11 // pred_check_branch
          %188 = sbr.rel (%p186) target = $region24
        $region23: #{tpu_custom_call.1} parent=11 // pred_region
          %190 = vsyncadd [#allocation6], 0
          %s191 = sshll.u32 %s3, 4
          %s192 = int_to_ptr.hbm [resolvable:$true] %s191
          %s193 = sshll.u32 [#allocation7], 4
          %s194 = int_to_ptr.vmem [resolvable:$true] %s193
          %199 = dma.hbm_to_vmem [thread:$0]  %s192, 1024, %s194, [#allocation6], 64, 64, 4
        $region24: #{tpu_custom_call.1} parent=11 // pred_fallthru
          _
        // Predicated region
        $region25: #{tpu_custom_call.1} parent=11 // pred_check
          %p200 = pneg %p128
        $region26: #{tpu_custom_call.1} parent=11 // pred_check_branch
          %202 = sbr.rel (%p200) target = $region28
        $region27: #{tpu_custom_call.1} parent=11 // pred_region
          _
        $region28: #{tpu_custom_call.1} parent=11 // pred_fallthru
          _
      $region12: #{tpu_custom_call.1} parent=5 // pred_fallthru
        _
      %p203 = scmp.lt.s32.totalorder %s18, 2
      // Predicated region
      $region29: #{tpu_custom_call.1} parent=5 // pred_check
        %p204 = pneg %p203
      $region30: #{tpu_custom_call.1} parent=5 // pred_check_branch
        %206 = sbr.rel (%p204) target = $region32
      $region31: #{tpu_custom_call.1} parent=5 // pred_region
        // Predicated region
        $region33: #{tpu_custom_call.1} parent=31 // pred_check
          %p207 = pneg %p38
        $region34: #{tpu_custom_call.1} parent=31 // pred_check_branch
          %209 = sbr.rel (%p207) target = $region36
        $region35: #{tpu_custom_call.1} parent=31 // pred_region
          %s210 = sand.u32 %s28, 1
          %s211 = scalar_lea.sflag [#allocation3], %s210
          %s212 = sand.u32 %s28, 1
          %s213 = smul.addr %s212, 4
          %s214 = scalar_lea.vmem [#allocation2], %s213
          %216 = vsyncadd %s211, 0
          %s217 = smul.addr %s18, 4
          %s218 = scalar_lea.hbm %s0, %s217
          %s220 = sshll.u32 %s218, 4
          %s221 = int_to_ptr.hbm [resolvable:$true] %s220
          %s222 = sshll.u32 %s214, 4
          %s223 = int_to_ptr.vmem [resolvable:$true] %s222
          %225 = dma.hbm_to_vmem [thread:$0]  %s221, 64, %s223, %s211
        $region36: #{tpu_custom_call.1} parent=31 // pred_fallthru
          _
      $region32: #{tpu_custom_call.1} parent=5 // pred_fallthru
        _
      %p226 = scmp.le.s32.totalorder 1, %s18
      %p227 = scmp.lt.s32.totalorder %s18, 3
      %p228 = pnand %p226, %p227
      %p229 = pneg %p228
      // Predicated region
      $region37: #{tpu_custom_call.1} parent=5 // pred_check
        _
      $region38: #{tpu_custom_call.1} parent=5 // pred_check_branch
        %231 = sbr.rel (%p228) target = $region40
      $region39: #{tpu_custom_call.1} parent=5 // pred_region
        %s232 = ssub.s32 %s18, 1
        %s233 = sand.u32 %s31, 1
        %s234 = scalar_lea.sflag [#allocation3], %s233
        %s235 = sand.u32 %s31, 1
        %s236 = smul.addr %s235, 4
        %s237 = scalar_lea.vmem [#allocation2], %s236
        // Predicated region
        $region41: #{tpu_custom_call.1} parent=39 // pred_check
          %p238 = pneg %p44
        $region42: #{tpu_custom_call.1} parent=39 // pred_check_branch
          %240 = sbr.rel (%p238) target = $region44
        $region43: #{tpu_custom_call.1} parent=39 // pred_region
          %242 = dma.done %s234, 64
        $region44: #{tpu_custom_call.1} parent=39 // pred_fallthru
          _
        // Predicated region
        $region45: #{tpu_custom_call.1} parent=39 // pred_check
          %p243 = pneg %p65
        $region46: #{tpu_custom_call.1} parent=39 // pred_check_branch
          %245 = sbr.rel (%p243) target = $region48
        $region47: #{tpu_custom_call.1} parent=39 // pred_region
          %247 = dma.done [#allocation6], 1024
        $region48: #{tpu_custom_call.1} parent=39 // pred_fallthru
          _
        // Predicated region
        $region49: #{tpu_custom_call.1} parent=39 // pred_check
          %p248 = pneg %p107
        $region50: #{tpu_custom_call.1} parent=39 // pred_check_branch
          %250 = sbr.rel (%p248) target = $region52
        $region51: #{tpu_custom_call.1} parent=39 // pred_region
          %252 = dma.done [#allocation6], 1024
        $region52: #{tpu_custom_call.1} parent=39 // pred_fallthru
          _
        %s253 = sand.u32 %s31, 1
        %s254 = scalar_lea.sflag [#allocation3], %s253
        %s255 = sand.u32 %s31, 1
        %s256 = smul.addr %s255, 4
        %s257 = scalar_lea.vmem [#allocation2], %s256
        %p258 = pneg %p44
        %p259 = pneg %p41
        %p260 = pneg %p65
        %p261 = pneg %p62
        %p262 = pneg %p86
        %p263 = pneg %p83
        %p264 = pneg %p107
        %p265 = pneg %p104
        %p266 = pneg %p128
        %p267 = pneg %p125
        %p268 = pneg %p154
        %p269 = pneg %p151
        %s270 = sand.u32 %s141, 1
        %s271 = scalar_lea.sflag [#allocation4], %s270
        %s272 = sand.u32 %s141, 1
        %s273 = smul.addr %s272, 8
        %s274 = scalar_lea.vmem [#allocation8], %s273
        %v275 = vld [vmem:[%s237] sm:$0xf]
        %v276 = vld [vmem:[#allocation5] sm:$0xf]
        %v277 = vld [vmem:[#allocation5 + $0x4] sm:$0xf]
        %v278 = vld [vmem:[#allocation5 + $0x8] sm:$0xf]
        %v279 = vld [vmem:[#allocation5 + $0xc] sm:$0xf]
        %v280 = vld [vmem:[#allocation5 + $0x10] sm:$0xf]
        %v281 = vld [vmem:[#allocation5 + $0x14] sm:$0xf]
        %v282 = vld [vmem:[#allocation5 + $0x18] sm:$0xf]
        %v283 = vld [vmem:[#allocation5 + $0x1c] sm:$0xf]
        %v284 = vld [vmem:[#allocation5 + $0x20] sm:$0xf]
        %v285 = vld [vmem:[#allocation5 + $0x24] sm:$0xf]
        %v286 = vld [vmem:[#allocation5 + $0x28] sm:$0xf]
        %v287 = vld [vmem:[#allocation5 + $0x2c] sm:$0xf]
        %v288 = vld [vmem:[#allocation5 + $0x30] sm:$0xf]
        %v289 = vld [vmem:[#allocation5 + $0x34] sm:$0xf]
        %v290 = vld [vmem:[#allocation5 + $0x38] sm:$0xf]
        %v291 = vld [vmem:[#allocation5 + $0x3c] sm:$0xf]
        %v292 = vld [vmem:[%s2] sm:$0x1]
        %v294 = vperm.slane %v292, 0
        %v312 = vunpack.c.l.b16 %v276
        %v313 = vunpack.c.l.b16 %v277
        %v314 = vunpack.c.l.b16 %v278
        %v315 = vunpack.c.l.b16 %v279
        %v316 = vunpack.c.l.b16 %v280
        %v317 = vunpack.c.l.b16 %v281
        %v318 = vunpack.c.l.b16 %v282
        %v319 = vunpack.c.l.b16 %v283
        %v320 = vunpack.c.l.b16 %v284
        %v321 = vunpack.c.l.b16 %v285
        %v322 = vunpack.c.l.b16 %v286
        %v323 = vunpack.c.l.b16 %v287
        %v324 = vunpack.c.l.b16 %v288
        %v325 = vunpack.c.l.b16 %v289
        %v326 = vunpack.c.l.b16 %v290
        %v327 = vunpack.c.l.b16 %v291
        %v328 = vpack.c.b16 %v313, %v312
        %v329 = vpack.c.b16 %v315, %v314
        %v330 = vpack.c.b16 %v317, %v316
        %v331 = vpack.c.b16 %v319, %v318
        %v332 = vpack.c.b16 %v321, %v320
        %v333 = vpack.c.b16 %v323, %v322
        %v334 = vpack.c.b16 %v325, %v324
        %v335 = vpack.c.b16 %v327, %v326
        %344 = vmatpush.bf16.msra.mxu0 %v335
        %345 = vmatpush.bf16.msra.mxu0 %v334
        %346 = vmatpush.bf16.msra.mxu0 %v333
        %347 = vmatpush.bf16.msra.mxu0 %v332
        %348 = vmatpush.bf16.msra.mxu0 %v331
        %349 = vmatpush.bf16.msra.mxu0 %v330
        %350 = vmatpush.bf16.msra.mxu0 %v329
        %351 = vmatpush.bf16.msra.mxu0 %v328
        %352 = vmatmul.bf16.gmra.mxu0 %v275
        %v353 = vpop.f32.mrf.mxu0
        %v354 = vadd.f32 %v294, %v353
        %v355 = vpop.f32.mrf.mxu0
        %356 = vdwg.mxu0
        %v357 = vmul.f32 %v354, 0.5
        %v358 = vmul.f32 %v354, 0.044715
        %v359 = vmul.f32 %v358, %v354
        %v360 = vmul.f32 %v359, %v354
        %v361 = vadd.f32 %v354, %v360
        %v362 = vmul.f32 %v361, 0.7978846
        %v363 = vtanh.pop %v362
        %v364 = vadd.f32 %v363, 1.0
        %v365 = vmul.f32 %v357, %v364
        %v366 = vpack.c.bf16 %v365, %v365
        %v367 = vld [vmem:[#allocation7] sm:$0xf]
        %v368 = vld [vmem:[#allocation7 + $0x4] sm:$0xf]
        %v369 = vld [vmem:[#allocation7 + $0x8] sm:$0xf]
        %v370 = vld [vmem:[#allocation7 + $0xc] sm:$0xf]
        %v371 = vld [vmem:[#allocation7 + $0x10] sm:$0xf]
        %v372 = vld [vmem:[#allocation7 + $0x14] sm:$0xf]
        %v373 = vld [vmem:[#allocation7 + $0x18] sm:$0xf]
        %v374 = vld [vmem:[#allocation7 + $0x1c] sm:$0xf]
        %v375 = vld [vmem:[#allocation7 + $0x20] sm:$0xf]
        %v376 = vld [vmem:[#allocation7 + $0x24] sm:$0xf]
        %v377 = vld [vmem:[#allocation7 + $0x28] sm:$0xf]
        %v378 = vld [vmem:[#allocation7 + $0x2c] sm:$0xf]
        %v379 = vld [vmem:[#allocation7 + $0x30] sm:$0xf]
        %v380 = vld [vmem:[#allocation7 + $0x34] sm:$0xf]
        %v381 = vld [vmem:[#allocation7 + $0x38] sm:$0xf]
        %v382 = vld [vmem:[#allocation7 + $0x3c] sm:$0xf]
        %v383 = vld [vmem:[%s4] sm:$0x1]
        %v385 = vperm.slane %v383, 0
        %v403 = vunpack.c.l.b16 %v367
        %v404 = vunpack.c.l.b16 %v368
        %v405 = vunpack.c.l.b16 %v369
        %v406 = vunpack.c.l.b16 %v370
        %v407 = vunpack.c.l.b16 %v371
        %v408 = vunpack.c.l.b16 %v372
        %v409 = vunpack.c.l.b16 %v373
        %v410 = vunpack.c.l.b16 %v374
        %v411 = vunpack.c.l.b16 %v375
        %v412 = vunpack.c.l.b16 %v376
        %v413 = vunpack.c.l.b16 %v377
        %v414 = vunpack.c.l.b16 %v378
        %v415 = vunpack.c.l.b16 %v379
        %v416 = vunpack.c.l.b16 %v380
        %v417 = vunpack.c.l.b16 %v381
        %v418 = vunpack.c.l.b16 %v382
        %v419 = vpack.c.b16 %v404, %v403
        %v420 = vpack.c.b16 %v406, %v405
        %v421 = vpack.c.b16 %v408, %v407
        %v422 = vpack.c.b16 %v410, %v409
        %v423 = vpack.c.b16 %v412, %v411
        %v424 = vpack.c.b16 %v414, %v413
        %v425 = vpack.c.b16 %v416, %v415
        %v426 = vpack.c.b16 %v418, %v417
        %435 = vmatpush.bf16.msra.mxu0 %v426
        %436 = vmatpush.bf16.msra.mxu0 %v425
        %437 = vmatpush.bf16.msra.mxu0 %v424
        %438 = vmatpush.bf16.msra.mxu0 %v423
        %439 = vmatpush.bf16.msra.mxu0 %v422
        %440 = vmatpush.bf16.msra.mxu0 %v421
        %441 = vmatpush.bf16.msra.mxu0 %v420
        %442 = vmatpush.bf16.msra.mxu0 %v419
        %443 = vmatmul.bf16.gmra.mxu0 %v366
        %v444 = vpop.f32.mrf.mxu0
        %v445 = vadd.f32 %v385, %v444
        %v446 = vpop.f32.mrf.mxu0
        %447 = vdwg.mxu0
        %448 = vst [vmem:[%s274] sm:$0xff] %v445
        %s449 = sand.u32 %s141, 1
        %s450 = scalar_lea.sflag [#allocation4], %s449
        %s451 = sand.u32 %s141, 1
        %s452 = smul.addr %s451, 8
        %s453 = scalar_lea.vmem [#allocation8], %s452
        // Predicated region
        $region53: #{tpu_custom_call.1} parent=39 // pred_check
          %p454 = pneg %p151
        $region54: #{tpu_custom_call.1} parent=39 // pred_check_branch
          %456 = sbr.rel (%p454) target = $region56
        $region55: #{tpu_custom_call.1} parent=39 // pred_region
          %458 = vsyncadd %s450, 0
          %s459 = smul.addr %s23, 8
          %s460 = scalar_lea.hbm %s5, %s459
          %s462 = sshll.u32 %s453, 4
          %s463 = int_to_ptr.vmem [resolvable:$true] %s462
          %s464 = sshll.u32 %s460, 4
          %s465 = int_to_ptr.hbm [resolvable:$true] %s464
          %467 = dma.vmem_to_hbm [thread:$0]  %s463, 128, %s465, %s450
        $region56: #{tpu_custom_call.1} parent=39 // pred_fallthru
          _
      $region40: #{tpu_custom_call.1} parent=5 // pred_fallthru
        _
      %p468 = scmp.le.s32.totalorder 2, %s18
      // Predicated region
      $region57: #{tpu_custom_call.1} parent=5 // pred_check
        %p469 = pneg %p468
      $region58: #{tpu_custom_call.1} parent=5 // pred_check_branch
        %471 = sbr.rel (%p469) target = $region60
      $region59: #{tpu_custom_call.1} parent=5 // pred_region
        %s472 = ssub.s32 %s18, 2
        // Predicated region
        $region61: #{tpu_custom_call.1} parent=59 // pred_check
          %p473 = pneg %p157
        $region62: #{tpu_custom_call.1} parent=59 // pred_check_branch
          %475 = sbr.rel (%p473) target = $region64
        $region63: #{tpu_custom_call.1} parent=59 // pred_region
          %s476 = sand.u32 %s142, 1
          %s477 = scalar_lea.sflag [#allocation4], %s476
          %s478 = sand.u32 %s142, 1
          %s479 = smul.addr %s478, 8
          %s480 = scalar_lea.vmem [#allocation8], %s479
          %482 = dma.done %s477, 128
        $region64: #{tpu_custom_call.1} parent=59 // pred_fallthru
          _
      $region60: #{tpu_custom_call.1} parent=5 // pred_fallthru
        _
    $region6: #{tpu_custom_call.1} parent=1 // loop_footer
      %s22 = sadd.s32 1, %s18
    $region7: #{tpu_custom_call.1} parent=1 // loop_footer_branch
      %17 = sbr.rel target = $region3
    $region8: #{tpu_custom_call.1} parent=1 // loop_exit
      _
    %483 = vsyncpa [#allocation3], 1
    %s484 = scalar_lea.sflag [#allocation3], 1
    %485 = vsyncpa %s484, 1
    %486 = vsyncpa [#allocation6], 1
    %487 = vsyncpa [#allocation4], 1
    %s488 = scalar_lea.sflag [#allocation4], 1
    %489 = vsyncpa %s488, 1

</llo_original>
